<compile_context>
chip_gen: v5e
topology: v5e:2x2
jax: 0.10.0
libtpu: 0.0.40
codegen_flags: <defaults>
</compile_context>

<pallas_src>
import functools

import jax
import jax.numpy as jnp
from jax.experimental import pallas as pl
from jax.experimental.pallas import tpu as pltpu


def _gat_kernel(x_ref, adjb_ref, w_ref, par_ref, out_ref, *, feat_dim):
    """One graph per grid step.

    x_ref   : [N, Fp]  raw node features, zero-padded lanes F..Fp
    adjb_ref: [N, N]   additive mask: 0.0 where edge j->i (or self-loop), -1e30 else
    w_ref   : [Fp, Fp] folded projection  W' = diag(gamma) @ W  (zero-padded)
    par_ref : [8, Fp]  row0=c(=beta@W), row1=a_src, row2=a_dst, row3=bias, rest 0
    out_ref : [N, Fp]
    """
    x = x_ref[...]                                      # [N, Fp] f32
    adj_bias = adjb_ref[...]                            # [N, N]
    w = w_ref[...]                                      # [Fp, Fp]
    c = par_ref[0:1, :]                                 # [1, Fp]
    a_src = par_ref[1:2, :]
    a_dst = par_ref[2:3, :]
    bias = par_ref[3:4, :]

    # ---- LayerNorm over the real feature dim (padding lanes are zero) ----
    inv_f = 1.0 / float(feat_dim)
    mean = jnp.sum(x, axis=-1, keepdims=True) * inv_f
    ex2 = jnp.sum(x * x, axis=-1, keepdims=True) * inv_f
    var = ex2 - mean * mean
    ln = (x - mean) * jax.lax.rsqrt(var + 1e-5)
    # (affine gamma/beta folded into w / c; padded rows of w are zero so the
    #  garbage values in ln's padded lanes never propagate)

    # ---- GATConv: projection (MXU) ----
    h = jnp.dot(ln, w, preferred_element_type=jnp.float32) + c          # [N, Fp]

    # ---- attention logits: s[i, j] = LeakyReLU(a_dst.h_i + a_src.h_j) + mask ----
    e_dst = jax.lax.dot_general(h, a_dst, (((1,), (1,)), ((), ())),
                                preferred_element_type=jnp.float32)     # [N, 1]
    e_src = jax.lax.dot_general(a_src, h, (((1,), (1,)), ((), ())),
                                preferred_element_type=jnp.float32)     # [1, N]
    s = e_dst + e_src                                                   # [N, N]
    s = jnp.where(s > 0, s, 0.2 * s) + adj_bias        # LeakyReLU(0.2), then mask

    # ---- softmax over incoming edges (masked entries underflow to exactly 0) ----
    s_max = jnp.max(s, axis=-1, keepdims=True)
    p = jnp.exp(s - s_max)
    alpha = p * pl.reciprocal(jnp.sum(p, axis=-1, keepdims=True), approx=True)

    # ---- aggregate (MXU) + bias, residual + ReLU ----
    aggr = jnp.dot(alpha, h, preferred_element_type=jnp.float32) + bias
    out_ref[...] = jnp.maximum(aggr + x, 0.0)


def _pad_lanes(arr, fp):
    pad = fp - arr.shape[-1]
    if pad <= 0:
        return arr
    cfg = [(0, 0)] * (arr.ndim - 1) + [(0, pad)]
    return jnp.pad(arr, cfg)


def _build_adj_bias(edge_index, n):
    """[B,2,E] int edge lists -> [B,N,N] additive softmax bias (0 / -1e30).

    adj[b, i, j] != 0 iff graph b has an edge j -> i (source j, target i),
    plus self-loops (PyG default). Built with one-hot matmuls (MXU), not scatter.
    """
    src = edge_index[:, 0, :]                                   # [B, E]
    dst = edge_index[:, 1, :]                                   # [B, E]
    src_oh = jax.nn.one_hot(src, n, dtype=jnp.float32)          # [B, E, N]
    dst_oh = jax.nn.one_hot(dst, n, dtype=jnp.float32)          # [B, E, N]
    adj = jnp.einsum("bei,bej->bij", dst_oh, src_oh)            # [B, N, N] (counts)
    adj = adj + jnp.eye(n, dtype=jnp.float32)[None]             # self-loops
    return jnp.where(adj > 0, 0.0, -1e30).astype(jnp.float32)


def gat_forward(x, edge_index, edge_attr, h_state, batch, params):
    """Batched GAT forward.

    x          : [B, N, F]   node features for B graphs of N nodes each
    edge_index : [B, 2, E]   (src, dst) per graph
    Returns (x_out [B, N, F], h_state).
    """
    del edge_attr, batch                      # unused by the reference forward pass
    b, n, f = x.shape
    fp = ((f + 127) // 128) * 128             # lane-dense padded feature width

    # ---- fold LayerNorm affine into the projection, pad everything to Fp ----
    w_fold = params["gamma"].reshape(f, 1) * params["w"]        # diag(gamma) @ W
    c = params["beta"] @ params["w"]                            # [1, F]
    w_pad = jnp.pad(w_fold, ((0, fp - f), (0, fp - f)))
    par_tile = jnp.concatenate(
        [_pad_lanes(c, fp),
         _pad_lanes(params["a_src"], fp),
         _pad_lanes(params["a_dst"], fp),
         _pad_lanes(params["bias"], fp),
         jnp.zeros((4, fp), jnp.float32)], axis=0)              # [8, Fp]

    x_pad = _pad_lanes(x, fp)                                   # [B, N, Fp]
    adj_bias = _build_adj_bias(edge_index, n)                   # [B, N, N]

    kernel = functools.partial(_gat_kernel, feat_dim=f)
    out_pad = pl.pallas_call(
        kernel,
        out_shape=jax.ShapeDtypeStruct((b, n, fp), jnp.float32),
        grid=(b,),
        in_specs=[
            pl.BlockSpec((None, n, fp), lambda g: (g, 0, 0)),   # x (per graph)
            pl.BlockSpec((None, n, n), lambda g: (g, 0, 0)),    # adj bias (per graph)
            pl.BlockSpec((fp, fp), lambda g: (0, 0)),           # W' (shared)
            pl.BlockSpec((8, fp), lambda g: (0, 0)),            # packed params (shared)
        ],
        out_specs=pl.BlockSpec((None, n, fp), lambda g: (g, 0, 0)),
        compiler_params=pltpu.CompilerParams(
            dimension_semantics=("parallel",)),
    )(x_pad, adj_bias, w_pad, par_tile)

    return out_pad[:, :, :f], h_state


def gat_reference(x, edge_index, params):
    """Pure-JAX reference (same math, no Pallas) for correctness checking."""
    def one(xg, eig):
        n = xg.shape[0]
        mean = xg.mean(-1, keepdims=True)
        var = xg.var(-1, keepdims=True)
        ln = (xg - mean) / jnp.sqrt(var + 1e-5)
        ln = ln * params["gamma"] + params["beta"]
        h = ln @ params["w"]
        src, dst = eig[0], eig[1]
        adj = jnp.zeros((n, n), jnp.float32).at[dst, src].set(1.0)
        adj = adj.at[jnp.arange(n), jnp.arange(n)].set(1.0)
        e_src = (h * params["a_src"]).sum(-1)
        e_dst = (h * params["a_dst"]).sum(-1)
        s = e_dst[:, None] + e_src[None, :]
        s = jnp.where(s > 0, s, 0.2 * s)
        s = jnp.where(adj > 0, s, -jnp.inf)
        alpha = jax.nn.softmax(s, axis=-1)
        aggr = alpha @ h + params["bias"]
        return jnp.maximum(aggr + xg, 0.0)
    return jax.vmap(one)(x, edge_index)


def init_params(key, feat_dim):
    k1, k2, k3 = jax.random.split(key, 3)
    lim = jnp.sqrt(6.0 / feat_dim)  # kaiming-uniform-ish, deterministic
    return {
        "gamma": jnp.ones((1, feat_dim), jnp.float32),
        "beta": jnp.zeros((1, feat_dim), jnp.float32),
        "w": jax.random.uniform(k1, (feat_dim, feat_dim), jnp.float32, -lim, lim),
        "a_src": jax.random.uniform(k2, (1, feat_dim), jnp.float32, -lim, lim),
        "a_dst": jax.random.uniform(k3, (1, feat_dim), jnp.float32, -lim, lim),
        "bias": jnp.zeros((1, feat_dim), jnp.float32),
    }


if __name__ == "__main__":
    node_size, extend_dim, bond_size = 8, 4, 6
    feat_dim = node_size * extend_dim          # 32
    num_graphs, num_nodes, num_edges = 8, 16, 40

    key = jax.random.PRNGKey(0)
    kx, ke, kh, kp = jax.random.split(key, 4)

    x = jax.random.normal(kx, (num_graphs, num_nodes, feat_dim), jnp.float32)
    edge_index = jax.random.randint(
        ke, (num_graphs, 2, num_edges), 0, num_nodes, jnp.int32)
    edge_attr = jax.random.normal(
        ke, (num_graphs, num_edges, bond_size), jnp.float32)
    h_state = jax.random.normal(kh, (num_graphs, num_nodes, 16), jnp.float32)
    batch = jnp.zeros((num_graphs, num_nodes), jnp.int32)

    params = init_params(kp, feat_dim)

    fwd = jax.jit(functools.partial(gat_forward, params=params))
    x_out, h_out = fwd(x, edge_index, edge_attr, h_state, batch)
    jax.block_until_ready((x_out, h_out))

    assert x_out.shape == (num_graphs, num_nodes, feat_dim)
    assert bool(jnp.all(x_out >= 0.0))         # ReLU output

    # Correctness vs. pure-JAX reference (loose tol: approx reciprocal in kernel).
    ref = gat_reference(x, edge_index, params)
    assert bool(jnp.allclose(x_out, ref, atol=2e-2, rtol=2e-2))

    print("KERNEL_OK")
</pallas_src>

<mosaic_0001>
module attributes {stable_mosaic.version = 11 : i64} {
  func.func @_gat_kernel(%arg0: i32, %arg1: memref<1x16x128xf32, #tpu.memory_space<vmem>>, %arg2: memref<1x16x16xf32, #tpu.memory_space<vmem>>, %arg3: memref<128x128xf32, #tpu.memory_space<vmem>>, %arg4: memref<8x128xf32, #tpu.memory_space<vmem>>, %arg5: memref<1x16x128xf32, #tpu.memory_space<vmem>>) attributes {dimension_semantics = [#tpu.dimension_semantics<parallel>], iteration_bounds = array<i64: 8>, scalar_prefetch = 0 : i64, scratch_operands = 0 : i64, tpu.core_type = #tpu.core_type<tc>, window_params = [{transform_indices = @transform_0, window_bounds = array<i64: 1, 16, 128>}, {transform_indices = @transform_1, window_bounds = array<i64: 1, 16, 16>}, {pipeline_mode = #tpu.pipeline_mode<synchronous>, transform_indices = @transform_2, window_bounds = array<i64: 128, 128>}, {pipeline_mode = #tpu.pipeline_mode<synchronous>, transform_indices = @transform_3, window_bounds = array<i64: 8, 128>}, {transform_indices = @transform_4, window_bounds = array<i64: 1, 16, 128>}]} {
    %c0 = arith.constant 0 : index
    %c0_0 = arith.constant 0 : index
    %c0_1 = arith.constant 0 : index
    %0 = vector.load %arg1[%c0, %c0_0, %c0_1] : memref<1x16x128xf32, #tpu.memory_space<vmem>>, vector<1x16x128xf32>
    %1 = vector.shape_cast %0 : vector<1x16x128xf32> to vector<16x128xf32>
    %c0_2 = arith.constant 0 : index
    %c0_3 = arith.constant 0 : index
    %c0_4 = arith.constant 0 : index
    %2 = vector.load %arg2[%c0_2, %c0_3, %c0_4] : memref<1x16x16xf32, #tpu.memory_space<vmem>>, vector<1x16x16xf32>
    %3 = vector.shape_cast %2 : vector<1x16x16xf32> to vector<16x16xf32>
    %c0_5 = arith.constant 0 : index
    %c0_6 = arith.constant 0 : index
    %4 = vector.load %arg3[%c0_5, %c0_6] : memref<128x128xf32, #tpu.memory_space<vmem>>, vector<128x128xf32>
    %c0_7 = arith.constant 0 : index
    %c0_8 = arith.constant 0 : index
    %5 = vector.load %arg4[%c0_7, %c0_8] : memref<8x128xf32, #tpu.memory_space<vmem>>, vector<1x128xf32>
    %c1 = arith.constant 1 : index
    %c0_9 = arith.constant 0 : index
    %6 = vector.load %arg4[%c1, %c0_9] : memref<8x128xf32, #tpu.memory_space<vmem>>, vector<1x128xf32>
    %c2 = arith.constant 2 : index
    %c0_10 = arith.constant 0 : index
    %7 = vector.load %arg4[%c2, %c0_10] : memref<8x128xf32, #tpu.memory_space<vmem>>, vector<1x128xf32>
    %c3 = arith.constant 3 : index
    %c0_11 = arith.constant 0 : index
    %8 = vector.load %arg4[%c3, %c0_11] : memref<8x128xf32, #tpu.memory_space<vmem>>, vector<1x128xf32>
    %cst = arith.constant dense<0.000000e+00> : vector<16xf32>
    %9 = vector.multi_reduction <add>, %1, %cst [1] : vector<16x128xf32> to vector<16xf32>
    %10 = vector.shape_cast %9 : vector<16xf32> to vector<16x1xf32>
    %cst_12 = arith.constant 3.125000e-02 : f32
    %11 = vector.broadcast %cst_12 : f32 to vector<16x1xf32>
    %12 = arith.mulf %10, %11 : vector<16x1xf32>
    %13 = arith.mulf %1, %1 : vector<16x128xf32>
    %cst_13 = arith.constant dense<0.000000e+00> : vector<16xf32>
    %14 = vector.multi_reduction <add>, %13, %cst_13 [1] : vector<16x128xf32> to vector<16xf32>
    %15 = vector.shape_cast %14 : vector<16xf32> to vector<16x1xf32>
    %cst_14 = arith.constant 3.125000e-02 : f32
    %16 = vector.broadcast %cst_14 : f32 to vector<16x1xf32>
    %17 = arith.mulf %15, %16 : vector<16x1xf32>
    %18 = arith.mulf %12, %12 : vector<16x1xf32>
    %19 = arith.subf %17, %18 : vector<16x1xf32>
    %20 = vector.broadcast %12 : vector<16x1xf32> to vector<16x128xf32>
    %21 = arith.subf %1, %20 : vector<16x128xf32>
    %cst_15 = arith.constant 9.99999974E-6 : f32
    %22 = vector.broadcast %cst_15 : f32 to vector<16x1xf32>
    %23 = arith.addf %19, %22 : vector<16x1xf32>
    %24 = math.rsqrt %23 : vector<16x1xf32>
    %25 = vector.broadcast %24 : vector<16x1xf32> to vector<16x128xf32>
    %26 = arith.mulf %21, %25 : vector<16x128xf32>
    %cst_16 = arith.constant dense<0.000000e+00> : vector<16x128xf32>
    %27 = tpu.matmul %26, %4, %cst_16 {dimension_numbers = #tpu.dot_dimension_numbers<[1], [0], [0], [1], [0, 0, 1, 1], [], []>} : vector<16x128xf32>, vector<128x128xf32>, vector<16x128xf32> -> vector<16x128xf32>
    %28 = vector.broadcast %5 : vector<1x128xf32> to vector<16x128xf32>
    %29 = arith.addf %27, %28 : vector<16x128xf32>
    %cst_17 = arith.constant dense<0.000000e+00> : vector<16x1xf32>
    %30 = tpu.matmul %29, %7, %cst_17 {dimension_numbers = #tpu.dot_dimension_numbers<[1], [1], [0], [0], [0, 0, 1, 0], [], []>} : vector<16x128xf32>, vector<1x128xf32>, vector<16x1xf32> -> vector<16x1xf32>
    %cst_18 = arith.constant dense<0.000000e+00> : vector<1x16xf32>
    %31 = tpu.matmul %6, %29, %cst_18 {dimension_numbers = #tpu.dot_dimension_numbers<[1], [1], [0], [0], [0, 0, 1, 0], [], []>} : vector<1x128xf32>, vector<16x128xf32>, vector<1x16xf32> -> vector<1x16xf32>
    %32 = vector.broadcast %30 : vector<16x1xf32> to vector<16x16xf32>
    %33 = vector.broadcast %31 : vector<1x16xf32> to vector<16x16xf32>
    %34 = arith.addf %32, %33 : vector<16x16xf32>
    %cst_19 = arith.constant 0.000000e+00 : f32
    %35 = vector.broadcast %cst_19 : f32 to vector<16x16xf32>
    %36 = arith.cmpf ogt, %34, %35 : vector<16x16xf32>
    %cst_20 = arith.constant 2.000000e-01 : f32
    %37 = vector.broadcast %cst_20 : f32 to vector<16x16xf32>
    %38 = arith.mulf %37, %34 : vector<16x16xf32>
    %39 = arith.select %36, %34, %38 : vector<16x16xi1>, vector<16x16xf32>
    %40 = arith.addf %39, %3 : vector<16x16xf32>
    %cst_21 = arith.constant dense<0xFF800000> : vector<16xf32>
    %41 = vector.multi_reduction <maximumf>, %40, %cst_21 [1] : vector<16x16xf32> to vector<16xf32>
    %42 = vector.shape_cast %41 : vector<16xf32> to vector<16x1xf32>
    %43 = vector.broadcast %42 : vector<16x1xf32> to vector<16x16xf32>
    %44 = arith.subf %40, %43 : vector<16x16xf32>
    %45 = math.exp %44 : vector<16x16xf32>
    %cst_22 = arith.constant dense<0.000000e+00> : vector<16xf32>
    %46 = vector.multi_reduction <add>, %45, %cst_22 [1] : vector<16x16xf32> to vector<16xf32>
    %47 = vector.shape_cast %46 : vector<16xf32> to vector<16x1xf32>
    %48 = tpu.reciprocal %47 {approx = true} : vector<16x1xf32> -> vector<16x1xf32>
    %49 = vector.broadcast %48 : vector<16x1xf32> to vector<16x16xf32>
    %50 = arith.mulf %45, %49 : vector<16x16xf32>
    %cst_23 = arith.constant dense<0.000000e+00> : vector<16x128xf32>
    %51 = tpu.matmul %50, %29, %cst_23 {dimension_numbers = #tpu.dot_dimension_numbers<[1], [0], [0], [1], [0, 0, 1, 1], [], []>} : vector<16x16xf32>, vector<16x128xf32>, vector<16x128xf32> -> vector<16x128xf32>
    %52 = vector.broadcast %8 : vector<1x128xf32> to vector<16x128xf32>
    %53 = arith.addf %51, %52 : vector<16x128xf32>
    %54 = arith.addf %53, %1 : vector<16x128xf32>
    %cst_24 = arith.constant 0.000000e+00 : f32
    %55 = vector.broadcast %cst_24 : f32 to vector<16x128xf32>
    %56 = arith.maximumf %54, %55 : vector<16x128xf32>
    %c0_25 = arith.constant 0 : index
    %c0_26 = arith.constant 0 : index
    %c0_27 = arith.constant 0 : index
    %57 = vector.load %arg5[%c0_25, %c0_26, %c0_27] : memref<1x16x128xf32, #tpu.memory_space<vmem>>, vector<1x16x128xf32>
    %58 = vector.shape_cast %57 : vector<1x16x128xf32> to vector<16x128xf32>
    %59 = vector.shape_cast %56 : vector<16x128xf32> to vector<1x16x128xf32>
    tpu.vector_store %arg5[%c0_25, %c0_26, %c0_27], %59 {strides = array<i32>} : memref<1x16x128xf32, #tpu.memory_space<vmem>>, vector<1x16x128xf32>,
    return
  }
  func.func @transform_0(%arg0: i32) -> (i32, i32, i32) {
    %c0_i32 = arith.constant 0 : i32
    %c0_i32_0 = arith.constant 0 : i32
    %c0_i32_1 = arith.constant 0 : i32
    return %arg0, %c0_i32, %c0_i32_0 : i32, i32, i32
  }
  func.func @transform_1(%arg0: i32) -> (i32, i32, i32) {
    %c0_i32 = arith.constant 0 : i32
    %c0_i32_0 = arith.constant 0 : i32
    %c0_i32_1 = arith.constant 0 : i32
    return %arg0, %c0_i32, %c0_i32_0 : i32, i32, i32
  }
  func.func @transform_2(%arg0: i32) -> (i32, i32) {
    %c0_i32 = arith.constant 0 : i32
    %c0_i32_0 = arith.constant 0 : i32
    %c0_i32_1 = arith.constant 0 : i32
    return %c0_i32, %c0_i32_0 : i32, i32
  }
  func.func @transform_3(%arg0: i32) -> (i32, i32) {
    %c0_i32 = arith.constant 0 : i32
    %c0_i32_0 = arith.constant 0 : i32
    %c0_i32_1 = arith.constant 0 : i32
    return %c0_i32, %c0_i32_0 : i32, i32
  }
  func.func @transform_4(%arg0: i32) -> (i32, i32, i32) {
    %c0_i32 = arith.constant 0 : i32
    %c0_i32_0 = arith.constant 0 : i32
    %c0_i32_1 = arith.constant 0 : i32
    return %arg0, %c0_i32, %c0_i32_0 : i32, i32, i32
  }
}

</mosaic_0001>

<llo_original>
// kernel: gat_forward.1
$region0: #{gat_forward.1}
  #allocation0 [shape = 'u32[]', space=smem, size = 0x4, offset = 0x4, fixed_abs, tag = 'smem constant byte address 0x4 - core index']
  #allocation1 [shape = 'u32[72,128]{1,0:T(1,128)}', space=vmem, size = 0x9000, scoped, tag = 'internal scratch']
  %s0 = inlined_call_operand.vmem [shape: f32[8,16,128], index: 0, kind: input, shape index: {}]
  %s1 = inlined_call_operand.vmem [shape: f32[8,16,16], index: 1, kind: input, shape index: {}]
  %s2 = inlined_call_operand.vmem [shape: f32[128,128], index: 2, kind: input, shape index: {}]
  %s3 = inlined_call_operand.vmem [shape: f32[8,128], index: 3, kind: input, shape index: {}]
  %s4 = inlined_call_operand.hbm [shape: f32[8,16,128], index: 4, kind: output, shape index: {}]
  %s5 = sld [smem:[#allocation0]]
  $region49: #{gat_forward.1} parent=0
    _
  %s7 = ssub.s32 1, %s5
  %s8 = scalar_select 0, %s7, %s5
  $region1: #{gat_forward.1} parent=0
    #allocation2 [shape = 'u8[16384]{0}', space=vmem, size = 0x4000, scoped, tag = 'output window, operand 0']
    #allocation3 [shape = 's32[2]{0}', space=sflag, size = 0x8, scoped, tag = 'scoped memory for gat_forward.1']
    %9 = vsyncpa [#allocation3], 0
    %s10 = scalar_lea.sflag [#allocation3], 1
    %11 = vsyncpa %s10, 0
    loop: start=0, step=1, limit=10
    $region2: #{gat_forward.1} parent=1 // loop_pre_header
      _
    $region3: #{gat_forward.1} parent=1 // loop_header
      %s13 = sphi 0, %s17
      %p14 = scmp.ge.s32.totalorder %s13, 10
      %s23 = sphi 0, %s25
      %s26 = sphi 0, %s23
      %s27 = sphi 0, %s26
      %s43 = sphi 0, %s27
      %s49 = sphi 0, %s51
      %s52 = sphi 0, %s49
      %s53 = sphi 0, %s52
      %s69 = sphi 0, %s53
      %s73 = sphi 0, %s73
      %s75 = sphi 0, %s73
      %s76 = sphi 0, %s75
      %s90 = sphi 0, %s76
      %s94 = sphi 0, %s94
      %s96 = sphi 0, %s94
      %s97 = sphi 0, %s96
      %s111 = sphi 0, %s97
      %s117 = sphi 0, %s119
      %s120 = sphi 0, %s117
      %s121 = sphi 0, %s120
      %s137 = sphi 0, %s121
    $region4: #{gat_forward.1} parent=1 // loop_header_branch
      %16 = sbr.rel (%p14) target = $region8
    $region5: #{gat_forward.1} parent=1 // loop_body
      %s18 = ssub.s32 %s13, 1
      %s19 = ssub.s32 %s13, 2
      %s20 = sadd.s32 %s13, 1
      %s21 = ssub.s32 %s13, %s20
      %p22 = scmp.eq.s32.totalorder %s21, 0
      %s24 = sadd.s32 %s23, 1
      %s25 = scalar_select %p22, %s23, %s24
      %p28 = pneg %p22
      %p29 = scmp.eq.s32.totalorder %s13, 7
      %p30 = por %p28, %p29
      %p31 = scmp.ne.s32.totalorder %s23, %s26
      %p32 = scmp.eq.s32.totalorder %s13, 0
      %p33 = por %p31, %p32
      %p34 = scmp.ne.s32.totalorder %s23, %s26
      %p35 = scmp.eq.s32.totalorder %s18, 7
      %p36 = por %p34, %p35
      %p37 = scmp.ne.s32.totalorder %s26, %s27
      %p38 = scmp.eq.s32.totalorder %s18, 0
      %p39 = por %p37, %p38
      %p40 = scmp.ne.s32.totalorder %s26, %s27
      %p41 = scmp.eq.s32.totalorder %s19, 7
      %p42 = por %p40, %p41
      %p44 = scmp.ne.s32.totalorder %s27, %s43
      %p45 = scmp.eq.s32.totalorder %s19, 0
      %p46 = por %p44, %p45
      %s47 = ssub.s32 %s13, %s20
      %p48 = scmp.eq.s32.totalorder %s47, 0
      %s50 = sadd.s32 %s49, 1
      %s51 = scalar_select %p48, %s49, %s50
      %p54 = pneg %p48
      %p55 = scmp.eq.s32.totalorder %s13, 7
      %p56 = por %p54, %p55
      %p57 = scmp.ne.s32.totalorder %s49, %s52
      %p58 = scmp.eq.s32.totalorder %s13, 0
      %p59 = por %p57, %p58
      %p60 = scmp.ne.s32.totalorder %s49, %s52
      %p61 = scmp.eq.s32.totalorder %s18, 7
      %p62 = por %p60, %p61
      %p63 = scmp.ne.s32.totalorder %s52, %s53
      %p64 = scmp.eq.s32.totalorder %s18, 0
      %p65 = por %p63, %p64
      %p66 = scmp.ne.s32.totalorder %s52, %s53
      %p67 = scmp.eq.s32.totalorder %s19, 7
      %p68 = por %p66, %p67
      %p70 = scmp.ne.s32.totalorder %s53, %s69
      %p71 = scmp.eq.s32.totalorder %s19, 0
      %p72 = por %p70, %p71
      %s74 = sadd.s32 %s73, 1
      %p77 = scmp.eq.s32.totalorder %s13, 7
      %p78 = scmp.ne.s32.totalorder %s73, %s75
      %p79 = scmp.eq.s32.totalorder %s13, 0
      %p80 = por %p78, %p79
      %p81 = scmp.ne.s32.totalorder %s73, %s75
      %p82 = scmp.eq.s32.totalorder %s18, 7
      %p83 = por %p81, %p82
      %p84 = scmp.ne.s32.totalorder %s75, %s76
      %p85 = scmp.eq.s32.totalorder %s18, 0
      %p86 = por %p84, %p85
      %p87 = scmp.ne.s32.totalorder %s75, %s76
      %p88 = scmp.eq.s32.totalorder %s19, 7
      %p89 = por %p87, %p88
      %p91 = scmp.ne.s32.totalorder %s76, %s90
      %p92 = scmp.eq.s32.totalorder %s19, 0
      %p93 = por %p91, %p92
      %s95 = sadd.s32 %s94, 1
      %p98 = scmp.eq.s32.totalorder %s13, 7
      %p99 = scmp.ne.s32.totalorder %s94, %s96
      %p100 = scmp.eq.s32.totalorder %s13, 0
      %p101 = por %p99, %p100
      %p102 = scmp.ne.s32.totalorder %s94, %s96
      %p103 = scmp.eq.s32.totalorder %s18, 7
      %p104 = por %p102, %p103
      %p105 = scmp.ne.s32.totalorder %s96, %s97
      %p106 = scmp.eq.s32.totalorder %s18, 0
      %p107 = por %p105, %p106
      %p108 = scmp.ne.s32.totalorder %s96, %s97
      %p109 = scmp.eq.s32.totalorder %s19, 7
      %p110 = por %p108, %p109
      %p112 = scmp.ne.s32.totalorder %s97, %s111
      %p113 = scmp.eq.s32.totalorder %s19, 0
      %p114 = por %p112, %p113
      %s115 = ssub.s32 %s13, %s20
      %p116 = scmp.eq.s32.totalorder %s115, 0
      %s118 = sadd.s32 %s117, 1
      %s119 = scalar_select %p116, %s117, %s118
      %p122 = pneg %p116
      %p123 = scmp.eq.s32.totalorder %s13, 7
      %p124 = por %p122, %p123
      %p125 = scmp.ne.s32.totalorder %s117, %s120
      %p126 = scmp.eq.s32.totalorder %s13, 0
      %p127 = por %p125, %p126
      %p128 = scmp.ne.s32.totalorder %s117, %s120
      %p129 = scmp.eq.s32.totalorder %s18, 7
      %p130 = por %p128, %p129
      %p131 = scmp.ne.s32.totalorder %s120, %s121
      %p132 = scmp.eq.s32.totalorder %s18, 0
      %p133 = por %p131, %p132
      %p134 = scmp.ne.s32.totalorder %s120, %s121
      %p135 = scmp.eq.s32.totalorder %s19, 7
      %p136 = por %p134, %p135
      %p138 = scmp.ne.s32.totalorder %s121, %s137
      %p139 = scmp.eq.s32.totalorder %s19, 0
      %p140 = por %p138, %p139
      %p141 = scmp.le.s32.totalorder 1, %s13
      %p142 = scmp.lt.s32.totalorder %s13, 9
      %p143 = pnand %p141, %p142
      %p144 = pneg %p143
      // Predicated region
      $region9: #{gat_forward.1} parent=5 // pred_check
        _
      $region10: #{gat_forward.1} parent=5 // pred_check_branch
        %146 = sbr.rel (%p143) target = $region12
      $region11: #{gat_forward.1} parent=5 // pred_region
        %s147 = ssub.s32 %s13, 1
        // Predicated region
        $region13: #{gat_forward.1} parent=11 // pred_check
          %p148 = pneg %p86
        $region14: #{gat_forward.1} parent=11 // pred_check_branch
          %150 = sbr.rel (%p148) target = $region16
        $region15: #{gat_forward.1} parent=11 // pred_region
          _
        $region16: #{gat_forward.1} parent=11 // pred_fallthru
          _
        // Predicated region
        $region17: #{gat_forward.1} parent=11 // pred_check
          %p151 = pneg %p107
        $region18: #{gat_forward.1} parent=11 // pred_check_branch
          %153 = sbr.rel (%p151) target = $region20
        $region19: #{gat_forward.1} parent=11 // pred_region
          _
        $region20: #{gat_forward.1} parent=11 // pred_fallthru
          _
      $region12: #{gat_forward.1} parent=5 // pred_fallthru
        _
      %p154 = scmp.lt.s32.totalorder %s13, 8
      // Predicated region
      $region21: #{gat_forward.1} parent=5 // pred_check
        %p155 = pneg %p154
      $region22: #{gat_forward.1} parent=5 // pred_check_branch
        %157 = sbr.rel (%p155) target = $region24
      $region23: #{gat_forward.1} parent=5 // pred_region
        // Predicated region
        $region25: #{gat_forward.1} parent=23 // pred_check
          %p158 = pneg %p33
        $region26: #{gat_forward.1} parent=23 // pred_check_branch
          %160 = sbr.rel (%p158) target = $region28
        $region27: #{gat_forward.1} parent=23 // pred_region
          %p161 = scmp.lt.s32.totalorder %s13, 7
          %s162 = scalar_select %p161, %s13, 7
          %s163 = smul.addr %s162, 2
          %s164 = smul.addr %s163, 8
          %s165 = scalar_lea.vmem %s0, %s164
        $region28: #{gat_forward.1} parent=23 // pred_fallthru
          _
        // Predicated region
        $region29: #{gat_forward.1} parent=23 // pred_check
          %p166 = pneg %p59
        $region30: #{gat_forward.1} parent=23 // pred_check_branch
          %168 = sbr.rel (%p166) target = $region32
        $region31: #{gat_forward.1} parent=23 // pred_region
          %p169 = scmp.lt.s32.totalorder %s13, 7
          %s170 = scalar_select %p169, %s13, 7
          %s171 = smul.addr %s170, 2
          %s172 = smul.addr %s171, 8
          %s173 = scalar_lea.vmem %s1, %s172
        $region32: #{gat_forward.1} parent=23 // pred_fallthru
          _
      $region24: #{gat_forward.1} parent=5 // pred_fallthru
        _
      %p174 = scmp.le.s32.totalorder 1, %s13
      %p175 = scmp.lt.s32.totalorder %s13, 9
      %p176 = pnand %p174, %p175
      %p177 = pneg %p176
      // Predicated region
      $region33: #{gat_forward.1} parent=5 // pred_check
        _
      $region34: #{gat_forward.1} parent=5 // pred_check_branch
        %179 = sbr.rel (%p176) target = $region36
      $region35: #{gat_forward.1} parent=5 // pred_region
        %s180 = ssub.s32 %s13, 1
        %p181 = scmp.lt.s32.totalorder %s18, 7
        %s182 = scalar_select %p181, %s18, 7
        %s183 = smul.addr %s182, 2
        %s184 = smul.addr %s183, 8
        %s185 = scalar_lea.vmem %s0, %s184
        %p186 = pneg %p39
        %p187 = pneg %p36
        %p188 = scmp.lt.s32.totalorder %s18, 7
        %s189 = scalar_select %p188, %s18, 7
        %s190 = smul.addr %s189, 2
        %s191 = smul.addr %s190, 8
        %s192 = scalar_lea.vmem %s1, %s191
        %p193 = pneg %p65
        %p194 = pneg %p62
        %p195 = pneg %p86
        %p196 = pneg %p83
        %p197 = pneg %p107
        %p198 = pneg %p104
        %p199 = pneg %p133
        %p200 = pneg %p130
        %s201 = sand.u32 %s120, 1
        %s202 = scalar_lea.sflag [#allocation3], %s201
        %s203 = sand.u32 %s120, 1
        %s204 = smul.addr %s203, 16
        %s205 = scalar_lea.vmem [#allocation2], %s204
        %p206 = scmp.lt.s32.totalorder %s18, 7
        %s207 = scalar_select %p206, %s18, 7
        %s208 = smul.addr %s207, 2
        %s209 = smul.addr %s208, 8
        %s210 = scalar_lea.vmem %s0, %s209
        %p211 = scmp.lt.s32.totalorder %s18, 7
        %s212 = scalar_select %p211, %s18, 7
        %s213 = smul.addr %s212, 2
        %s214 = smul.addr %s213, 8
        %s215 = scalar_lea.vmem %s1, %s214
        %v216 = vld [vmem:[%s210] sm:$0xff]
        %v217 = vld [vmem:[%s210 + $0x8] sm:$0xff]
        %v218 = vld [vmem:[%s215] sm:$0xff]
        %v219 = vld [vmem:[%s215 + $0x8] sm:$0xff]
        %v220 = vld [vmem:[%s2] sm:$0xff]
        %v221 = vld [vmem:[%s2 + $0x8] sm:$0xff]
        %v222 = vld [vmem:[%s2 + $0x10] sm:$0xff]
        %v223 = vld [vmem:[%s2 + $0x18] sm:$0xff]
        %v224 = vld [vmem:[%s2 + $0x20] sm:$0xff]
        %v225 = vld [vmem:[%s2 + $0x28] sm:$0xff]
        %v226 = vld [vmem:[%s2 + $0x30] sm:$0xff]
        %v227 = vld [vmem:[%s2 + $0x38] sm:$0xff]
        %v228 = vld [vmem:[%s2 + $0x40] sm:$0xff]
        %v229 = vld [vmem:[%s2 + $0x48] sm:$0xff]
        %v230 = vld [vmem:[%s2 + $0x50] sm:$0xff]
        %v231 = vld [vmem:[%s2 + $0x58] sm:$0xff]
        %v232 = vld [vmem:[%s2 + $0x60] sm:$0xff]
        %v233 = vld [vmem:[%s2 + $0x68] sm:$0xff]
        %v234 = vld [vmem:[%s2 + $0x70] sm:$0xff]
        %v235 = vld [vmem:[%s2 + $0x78] sm:$0xff]
        %v236 = vld [vmem:[%s3] sm:$0x1]
        %v237 = vld [vmem:[%s3 + $0x1] sm:$0x1]
        %v238 = vld [vmem:[%s3 + $0x2] sm:$0x1]
        %v239 = vld [vmem:[%s3 + $0x3] sm:$0x1]
        %240 = vadd.xlane.f32.xlu0 %v216
        %v241 = vpop.xlane.xlu0 %240
        %242 = vadd.xlane.f32.xlu0 %v217
        %v243 = vpop.xlane.xlu0 %242
        %v244 = vmul.f32 %v241, 0.03125
        %v245 = vmul.f32 %v243, 0.03125
        %v246 = vmul.f32 %v216, %v216
        %v247 = vmul.f32 %v217, %v217
        %248 = vadd.xlane.f32.xlu0 %v246
        %v249 = vpop.xlane.xlu0 %248
        %250 = vadd.xlane.f32.xlu0 %v247
        %v251 = vpop.xlane.xlu0 %250
        %v252 = vmul.f32 %v249, 0.03125
        %v253 = vmul.f32 %v251, 0.03125
        %v254 = vmul.f32 %v244, %v244
        %v255 = vmul.f32 %v245, %v245
        %v256 = vsub.f32 %v252, %v254
        %v257 = vsub.f32 %v253, %v255
        %v258 = vsub.f32 %v216, %v244
        %v259 = vsub.f32 %v217, %v245
        %v260 = vadd.f32 %v256, 1e-05
        %v261 = vadd.f32 %v257, 1e-05
        %v262 = vrsqrt.pop %v260
        %v263 = vmul.f32 %v262, %v260
        %v264 = vmul.f32 %v263, %v262
        %v265 = vmul.f32 0.5, %v264
        %v266 = vsub.f32 1.5, %v265
        %v267 = vmul.f32 %v262, %v266
        %vm268 = vweird.f32 %v260
        %vm269 = vweird.f32 %v262
        %vm270 = vmor %vm268, %vm269
        %v271 = vsel %vm270, %v262, %v267
        %v272 = vrsqrt.pop %v261
        %v273 = vmul.f32 %v272, %v261
        %v274 = vmul.f32 %v273, %v272
        %v275 = vmul.f32 0.5, %v274
        %v276 = vsub.f32 1.5, %v275
        %v277 = vmul.f32 %v272, %v276
        %vm278 = vweird.f32 %v261
        %vm279 = vweird.f32 %v272
        %vm280 = vmor %vm278, %vm279
        %v281 = vsel %vm280, %v272, %v277
        %v282 = vmul.f32 %v258, %v271
        %v283 = vmul.f32 %v259, %v281
        %v284 = vperm.slane %v236, 0
        %285 = vmatpush.msra.mxu0 %v235
        %286 = vmatpush.msra.mxu0 %v234
        %287 = vmatpush.msra.mxu0 %v233
        %288 = vmatpush.msra.mxu0 %v232
        %289 = vmatpush.msra.mxu0 %v231
        %290 = vmatpush.msra.mxu0 %v230
        %291 = vmatpush.msra.mxu0 %v229
        %292 = vmatpush.msra.mxu0 %v228
        %293 = vmatpush.msra.mxu0 %v227
        %294 = vmatpush.msra.mxu0 %v226
        %295 = vmatpush.msra.mxu0 %v225
        %296 = vmatpush.msra.mxu0 %v224
        %297 = vmatpush.msra.mxu0 %v223
        %298 = vmatpush.msra.mxu0 %v222
        %299 = vmatpush.msra.mxu0 %v221
        %300 = vmatpush.msra.mxu0 %v220
        %301 = vmatmul.f32.gmra.mxu0 %v282
        %v302 = vpop.f32.mrf.mxu0
        %v303 = vadd.f32 %v284, %v302
        %304 = vmatmul.f32.gmra.mxu0 %v283
        %v305 = vpop.f32.mrf.mxu0
        %v306 = vadd.f32 %v284, %v305
        %307 = vdwg.mxu0
        %v308 = vperm.slane %v238, 0
        %v309 = vmul.f32 %v303, %v308
        %v310 = vmul.f32 %v306, %v308
        %311 = vadd.xlane.f32.xlu0 %v309
        %v312 = vpop.xlane.xlu0 %311
        %313 = vadd.xlane.f32.xlu0 %v310
        %v314 = vpop.xlane.xlu0 %313
        %315 = vmatpush.xpose.msra.mxu0 0.0
        %316 = vmatpush.xpose.msra.mxu0 0.0
        %317 = vmatpush.xpose.msra.mxu0 0.0
        %318 = vmatpush.xpose.msra.mxu0 0.0
        %319 = vmatpush.xpose.msra.mxu0 0.0
        %320 = vmatpush.xpose.msra.mxu0 0.0
        %321 = vmatpush.xpose.msra.mxu0 0.0
        %322 = vmatpush.xpose.msra.mxu0 0.0
        %323 = vmatpush.xpose.msra.mxu0 0.0
        %324 = vmatpush.xpose.msra.mxu0 0.0
        %325 = vmatpush.xpose.msra.mxu0 0.0
        %326 = vmatpush.xpose.msra.mxu0 0.0
        %327 = vmatpush.xpose.msra.mxu0 0.0
        %328 = vmatpush.xpose.msra.mxu0 0.0
        %329 = vmatpush.xpose.msra.mxu0 %v306
        %330 = vmatpush.xpose.msra.mxu0 %v303
        %331 = vmatmul.f32.gmra.mxu0 %v237
        %v332 = vpop.f32.mrf.mxu0
        %v333 = vadd.f32 0.0, %v332
        %334 = vdwg.mxu0
        %v335 = vperm.slane %v333, 0
        %v336 = vadd.f32 %v312, %v335
        %v337 = vadd.f32 %v314, %v335
        %vm338 = vcmp.gt.f32.partialorder %v336, 0.0
        %vm339 = vcmp.gt.f32.partialorder %v337, 0.0
        %v340 = vmul.f32 %v336, 0.2
        %v341 = vmul.f32 %v337, 0.2
        %v342 = vsel %vm338, %v336, %v340
        %v343 = vsel %vm339, %v337, %v341
        %v344 = vadd.f32 %v342, %v218
        %v345 = vadd.f32 %v343, %v219
        %vm346 = vcmask 130048
        %v347 = vsel %vm346, %v344, -inf
        %348 = vmax.xlane.f32.xlu0 %v347
        %v349 = vpop.xlane.xlu0 %348
        %v350 = vsel %vm346, %v345, -inf
        %351 = vmax.xlane.f32.xlu0 %v350
        %v352 = vpop.xlane.xlu0 %351
        %v353 = vsub.f32 %v344, %v349
        %v354 = vsub.f32 %v345, %v352
        %v355 = vmul.f32 %v353, 1.442695
        %v356 = vpow.pop %v355
        %v357 = vmul.f32 %v354, 1.442695
        %v358 = vpow.pop %v357
        %v359 = vsel %vm346, %v356, 0.0
        %360 = vadd.xlane.f32.xlu0 %v359
        %v361 = vpop.xlane.xlu0 %360
        %v362 = vsel %vm346, %v358, 0.0
        %363 = vadd.xlane.f32.xlu0 %v362
        %v364 = vpop.xlane.xlu0 %363
        %v365 = vrcp.pop %v361
        %v366 = vrcp.pop %v364
        %v367 = vmul.f32 %v356, %v365
        %v368 = vmul.f32 %v358, %v366
        %v369 = vperm.slane %v239, 0
        %v371 = vsel %vm346, %v367, 0
        %v374 = vsel %vm346, %v368, 0
        %376 = vmatpush.msra.mxu0 0.0
        %377 = vmatpush.msra.mxu0 0.0
        %378 = vmatpush.msra.mxu0 0.0
        %379 = vmatpush.msra.mxu0 0.0
        %380 = vmatpush.msra.mxu0 0.0
        %381 = vmatpush.msra.mxu0 0.0
        %382 = vmatpush.msra.mxu0 0.0
        %383 = vmatpush.msra.mxu0 0.0
        %384 = vmatpush.msra.mxu0 0.0
        %385 = vmatpush.msra.mxu0 0.0
        %386 = vmatpush.msra.mxu0 0.0
        %387 = vmatpush.msra.mxu0 0.0
        %388 = vmatpush.msra.mxu0 0.0
        %389 = vmatpush.msra.mxu0 0.0
        %390 = vmatpush.msra.mxu0 %v306
        %391 = vmatpush.msra.mxu0 %v303
        %392 = vmatmul.f32.gmra.mxu0 %v371
        %v393 = vpop.f32.mrf.mxu0
        %v394 = vadd.f32 %v369, %v393
        %395 = vmatmul.f32.gmra.mxu0 %v374
        %v396 = vpop.f32.mrf.mxu0
        %v397 = vadd.f32 %v369, %v396
        %398 = vdwg.mxu0
        %v399 = vadd.f32 %v394, %v216
        %v400 = vadd.f32 %v397, %v217
        %v401 = vmax.f32 %v399, 0.0
        %v402 = vmax.f32 %v400, 0.0
        %403 = vst [vmem:[%s205] sm:$0xff] %v401
        %404 = vst [vmem:[%s205 + $0x8] sm:$0xff] %v402
        %s405 = sand.u32 %s120, 1
        %s406 = scalar_lea.sflag [#allocation3], %s405
        %s407 = sand.u32 %s120, 1
        %s408 = smul.addr %s407, 16
        %s409 = scalar_lea.vmem [#allocation2], %s408
        // Predicated region
        $region37: #{gat_forward.1} parent=35 // pred_check
          %p410 = pneg %p130
        $region38: #{gat_forward.1} parent=35 // pred_check_branch
          %412 = sbr.rel (%p410) target = $region40
        $region39: #{gat_forward.1} parent=35 // pred_region
          %414 = vsyncadd %s406, 0
          %s415 = smul.addr %s18, 2
          %s416 = smul.addr %s415, 8
          %s417 = scalar_lea.hbm %s4, %s416
          %s418 = sshll.u32 %s409, 4
          %s419 = int_to_ptr.vmem [resolvable:$true] %s418
          %s420 = sshll.u32 %s417, 4
          %s421 = int_to_ptr.hbm [resolvable:$true] %s420
          %426 = dma.vmem_to_hbm [thread:$0]  %s419, 256, %s421, %s406, 128, 128, 8
        $region40: #{gat_forward.1} parent=35 // pred_fallthru
          _
      $region36: #{gat_forward.1} parent=5 // pred_fallthru
        _
      %p427 = scmp.le.s32.totalorder 2, %s13
      // Predicated region
      $region41: #{gat_forward.1} parent=5 // pred_check
        %p428 = pneg %p427
      $region42: #{gat_forward.1} parent=5 // pred_check_branch
        %430 = sbr.rel (%p428) target = $region44
      $region43: #{gat_forward.1} parent=5 // pred_region
        %s431 = ssub.s32 %s13, 2
        // Predicated region
        $region45: #{gat_forward.1} parent=43 // pred_check
          %p432 = pneg %p136
        $region46: #{gat_forward.1} parent=43 // pred_check_branch
          %434 = sbr.rel (%p432) target = $region48
        $region47: #{gat_forward.1} parent=43 // pred_region
          %s435 = sand.u32 %s121, 1
          %s436 = scalar_lea.sflag [#allocation3], %s435
          %s437 = sand.u32 %s121, 1
          %s438 = smul.addr %s437, 16
          %s439 = scalar_lea.vmem [#allocation2], %s438
          %441 = dma.done %s436, 256
        $region48: #{gat_forward.1} parent=43 // pred_fallthru
          _
      $region44: #{gat_forward.1} parent=5 // pred_fallthru
        _
    $region6: #{gat_forward.1} parent=1 // loop_footer
      %s17 = sadd.s32 1, %s13
    $region7: #{gat_forward.1} parent=1 // loop_footer_branch
      %12 = sbr.rel target = $region3
    $region8: #{gat_forward.1} parent=1 // loop_exit
      _
    %442 = vsyncpa [#allocation3], 1
    %s443 = scalar_lea.sflag [#allocation3], 1
    %444 = vsyncpa %s443, 1

</llo_original>
